<compile_context>
chip_gen: v6e
topology: v6e:2x2x1
jax: 0.10.0
libtpu: 0.0.40
codegen_flags: <defaults>
</compile_context>

<pallas_src>
import math

import jax
import jax.numpy as jnp
from jax.experimental import pallas as pl
from jax.experimental.pallas import tpu as pltpu


# ----------------------------- tiling helpers --------------------------------

def _vmem_capacity_bytes():
    try:
        info = pltpu.get_tpu_info()
        return int(getattr(info, "vmem_capacity_bytes", 64 * 1024 * 1024))
    except Exception:
        return 64 * 1024 * 1024


def _sublane_quantum(dtype):
    # bf16 packs 2 rows/sublane (int8: 4) -> keep sublane tiles pack-aligned.
    if dtype == jnp.bfloat16:
        return 16
    if dtype == jnp.int8:
        return 32
    return 8


def _gemm_config(dtype):
    """Per-generation GEMM tile targets + scoped-VMEM budget."""
    if _vmem_capacity_bytes() >= 100 * 1024 * 1024:          # v5e / v6e (128 MiB)
        tm, tn = 512, 1024
        tk = 1024 if dtype == jnp.bfloat16 else 512
        vmem_limit = 96 * 1024 * 1024
    else:                                                    # v7x (64 MiB / TC)
        tm, tn, tk = 256, 512, 512
        vmem_limit = 48 * 1024 * 1024
    return tm, tn, tk, vmem_limit


def _pick_tile(dim, target, quantum):
    """Largest quantum-multiple divisor of `dim` <= target (full dim if small)."""
    if dim <= target:
        return dim
    t = (min(target, dim) // quantum) * quantum
    while t >= quantum:
        if dim % t == 0:
            return t
        t -= quantum
    # No quantum-aligned divisor: clamp to the largest exact divisor <= target so
    # a stray shape can never exceed the scoped-VMEM budget.
    # TODO(synk): switch to pl.cdiv grids with masked edge tiles for odd shapes.
    for t in range(min(target, dim), 0, -1):
        if dim % t == 0:
            return t
    return dim


def _matmul_grid(M, N, K, tm, tn, tk, dtype):
    tm = _pick_tile(M, tm, _sublane_quantum(dtype))
    tn = _pick_tile(N, tn, 128)
    tk = _pick_tile(K, tk, 128)
    return (M // tm, N // tn, K // tk), tm, tn, tk


# ----------------------------- projection kernels -----------------------------

def _matmul_kernel(x_ref, w_ref, o_ref, acc_ref):
    @pl.when(pl.program_id(2) == 0)
    def _():
        acc_ref[...] = jnp.zeros_like(acc_ref)

    acc_ref[...] += jnp.dot(x_ref[...], w_ref[...],
                            preferred_element_type=jnp.float32)

    @pl.when(pl.program_id(2) == pl.num_programs(2) - 1)
    def _():
        o_ref[...] = acc_ref[...].astype(o_ref.dtype)


def _linear_kernel(x_ref, w_ref, b_ref, o_ref, acc_ref):
    # out = x @ W_t + b   (torch Linear; W pre-transposed to (K, N))
    @pl.when(pl.program_id(2) == 0)
    def _():
        acc_ref[...] = jnp.zeros_like(acc_ref)

    acc_ref[...] += jnp.dot(x_ref[...], w_ref[...],
                            preferred_element_type=jnp.float32)

    @pl.when(pl.program_id(2) == pl.num_programs(2) - 1)
    def _():
        o_ref[...] = (acc_ref[...] + b_ref[...]).astype(o_ref.dtype)


def _lora_finalize_kernel(x_ref, w_ref, b_ref, xa_ref, lb_ref, o_ref, acc_ref):
    # out = x @ W_t + b + xa @ lb      (xa = x @ A_t hoisted outside this kernel,
    # lb pre-scaled; rank-r matmul happens only once per (i, j) tile at finalize)
    @pl.when(pl.program_id(2) == 0)
    def _():
        acc_ref[...] = jnp.zeros_like(acc_ref)

    acc_ref[...] += jnp.dot(x_ref[...], w_ref[...],
                            preferred_element_type=jnp.float32)

    @pl.when(pl.program_id(2) == pl.num_programs(2) - 1)
    def _():
        lora = jnp.dot(xa_ref[...], lb_ref[...],
                       preferred_element_type=jnp.float32)
        o_ref[...] = (acc_ref[...] + b_ref[...] + lora).astype(o_ref.dtype)


def pallas_matmul(x, w_t):
    """x:(M,K) @ w_t:(K,N) -> (M,N) (no bias)."""
    M, K = x.shape
    N = w_t.shape[1]
    tm0, tn0, tk0, vmem_limit = _gemm_config(x.dtype)
    grid, tm, tn, tk = _matmul_grid(M, N, K, tm0, tn0, tk0, x.dtype)
    return pl.pallas_call(
        _matmul_kernel,
        out_shape=jax.ShapeDtypeStruct((M, N), x.dtype),
        grid=grid,
        in_specs=[pl.BlockSpec((tm, tk), lambda i, j, k: (i, k)),
                  pl.BlockSpec((tk, tn), lambda i, j, k: (k, j))],
        out_specs=pl.BlockSpec((tm, tn), lambda i, j, k: (i, j)),
        scratch_shapes=[pltpu.VMEM((tm, tn), jnp.float32)],
        compiler_params=pltpu.CompilerParams(
            dimension_semantics=("parallel", "parallel", "arbitrary"),
            vmem_limit_bytes=vmem_limit),
    )(x, w_t)


def pallas_linear(x, w_t, b):
    """x:(M,K) @ w_t:(K,N) + b:(1,N) -> (M,N)."""
    M, K = x.shape
    N = w_t.shape[1]
    tm0, tn0, tk0, vmem_limit = _gemm_config(x.dtype)
    grid, tm, tn, tk = _matmul_grid(M, N, K, tm0, tn0, tk0, x.dtype)
    return pl.pallas_call(
        _linear_kernel,
        out_shape=jax.ShapeDtypeStruct((M, N), x.dtype),
        grid=grid,
        in_specs=[pl.BlockSpec((tm, tk), lambda i, j, k: (i, k)),
                  pl.BlockSpec((tk, tn), lambda i, j, k: (k, j)),
                  pl.BlockSpec((1, tn), lambda i, j, k: (0, j))],
        out_specs=pl.BlockSpec((tm, tn), lambda i, j, k: (i, j)),
        scratch_shapes=[pltpu.VMEM((tm, tn), jnp.float32)],
        compiler_params=pltpu.CompilerParams(
            dimension_semantics=("parallel", "parallel", "arbitrary"),
            vmem_limit_bytes=vmem_limit),
    )(x, w_t, b)


def pallas_lora_linear(x, w_t, b, la_t, lb_t_scaled):
    """Factorized LoRA Linear: x@w_t + b + (x@la_t)@lb_t_scaled, with x@la_t hoisted."""
    xa = pallas_matmul(x, la_t)                       # tiny (M, r) intermediate
    M, K = x.shape
    N = w_t.shape[1]
    r = la_t.shape[1]
    tm0, tn0, tk0, vmem_limit = _gemm_config(x.dtype)
    grid, tm, tn, tk = _matmul_grid(M, N, K, tm0, tn0, tk0, x.dtype)
    return pl.pallas_call(
        _lora_finalize_kernel,
        out_shape=jax.ShapeDtypeStruct((M, N), x.dtype),
        grid=grid,
        in_specs=[pl.BlockSpec((tm, tk), lambda i, j, k: (i, k)),
                  pl.BlockSpec((tk, tn), lambda i, j, k: (k, j)),
                  pl.BlockSpec((1, tn), lambda i, j, k: (0, j)),
                  pl.BlockSpec((tm, r), lambda i, j, k: (i, 0)),
                  pl.BlockSpec((r, tn), lambda i, j, k: (0, j))],
        out_specs=pl.BlockSpec((tm, tn), lambda i, j, k: (i, j)),
        scratch_shapes=[pltpu.VMEM((tm, tn), jnp.float32)],
        compiler_params=pltpu.CompilerParams(
            dimension_semantics=("parallel", "parallel", "arbitrary"),
            vmem_limit_bytes=vmem_limit),
    )(x, w_t, b, xa, lb_t_scaled)


# ----------------------------- attention kernels ------------------------------

def _make_flash_kernel(has_mask):
    # grid = (b*H + h, query tile, key tile); online softmax over the key axis.
    def kernel(*refs):
        if has_mask:
            q_ref, k_ref, v_ref, m_ref, o_ref, m_sc, l_sc, acc_sc = refs
        else:
            q_ref, k_ref, v_ref, o_ref, m_sc, l_sc, acc_sc = refs
        ki = pl.program_id(2)

        @pl.when(ki == 0)
        def _():
            m_sc[...] = jnp.full_like(m_sc, -jnp.inf)
            l_sc[...] = jnp.zeros_like(l_sc)
            acc_sc[...] = jnp.zeros_like(acc_sc)

        # 1/sqrt(head_dim) is folded into the Q projection parameters.
        s = jax.lax.dot_general(q_ref[0], k_ref[0], (((1,), (1,)), ((), ())),
                                preferred_element_type=jnp.float32)
        if has_mask:
            s = s + m_ref[0].astype(jnp.float32)

        m_new = jnp.maximum(m_sc[...], jnp.max(s, axis=-1, keepdims=True))
        alpha = jnp.exp(m_sc[...] - m_new)
        p = jnp.exp(s - m_new)
        l_sc[...] = alpha * l_sc[...] + jnp.sum(p, axis=-1, keepdims=True)
        acc_sc[...] = alpha * acc_sc[...] + jnp.dot(
            p.astype(v_ref.dtype), v_ref[0], preferred_element_type=jnp.float32)
        m_sc[...] = m_new

        @pl.when(ki == pl.num_programs(2) - 1)
        def _():
            o_ref[0] = (acc_sc[...] *
                        pl.reciprocal(l_sc[...], approx=True)).astype(o_ref.dtype)
    return kernel


def pallas_flash_attention(qh, kh, vh, attn_mask):
    """qh:(B*H,T,hd), kh/vh:(B*H,S,hd), attn_mask:(B*H,T,S) or None -> (B*H,T,hd)."""
    BH, T, hd = qh.shape
    S = kh.shape[1]
    has_mask = attn_mask is not None
    subq = _sublane_quantum(qh.dtype)
    tq = _pick_tile(T, 256, subq)
    tk = _pick_tile(S, 512, 128 if has_mask else subq)
    vmem_limit = _gemm_config(qh.dtype)[3]

    in_specs = [pl.BlockSpec((1, tq, hd), lambda b, qi, ki: (b, qi, 0)),
                pl.BlockSpec((1, tk, hd), lambda b, qi, ki: (b, ki, 0)),
                pl.BlockSpec((1, tk, hd), lambda b, qi, ki: (b, ki, 0))]
    args = [qh, kh, vh]
    if has_mask:
        in_specs.append(pl.BlockSpec((1, tq, tk), lambda b, qi, ki: (b, qi, ki)))
        args.append(attn_mask)

    return pl.pallas_call(
        _make_flash_kernel(has_mask),
        out_shape=jax.ShapeDtypeStruct((BH, T, hd), qh.dtype),
        grid=(BH, T // tq, S // tk),
        in_specs=in_specs,
        out_specs=pl.BlockSpec((1, tq, hd), lambda b, qi, ki: (b, qi, 0)),
        scratch_shapes=[pltpu.VMEM((tq, 1), jnp.float32),
                        pltpu.VMEM((tq, 1), jnp.float32),
                        pltpu.VMEM((tq, hd), jnp.float32)],
        compiler_params=pltpu.CompilerParams(
            dimension_semantics=("parallel", "parallel", "arbitrary"),
            vmem_limit_bytes=vmem_limit),
    )(*args)


def _make_attn_weights_kernel(num_heads, has_mask):
    # need_weights=True path (analysis / small shapes): full S per step, exact
    # softmax, per-head stores (one head live at a time), head-averaged weights.
    def kernel(*refs):
        if has_mask:
            q_ref, k_ref, v_ref, m_ref, o_ref, aw_ref = refs
        else:
            q_ref, k_ref, v_ref, o_ref, aw_ref = refs
        tq = q_ref.shape[1]
        S = k_ref.shape[1]
        aw_acc = jnp.zeros((tq, S), dtype=jnp.float32)
        for h in range(num_heads):                        # static unroll over heads
            s = jax.lax.dot_general(q_ref[h], k_ref[h], (((1,), (1,)), ((), ())),
                                    preferred_element_type=jnp.float32)
            if has_mask:
                s = s + m_ref[h].astype(jnp.float32)
            s = s - jnp.max(s, axis=-1, keepdims=True)
            p = jnp.exp(s)
            p = p / jnp.sum(p, axis=-1, keepdims=True)    # exact (aw is consumed)
            o_ref[h] = jnp.dot(p.astype(v_ref.dtype), v_ref[h],
                               preferred_element_type=jnp.float32).astype(o_ref.dtype)
            aw_acc = aw_acc + p
        aw_ref[0] = aw_acc * (1.0 / num_heads)
    return kernel


def pallas_attention_with_weights(qh, kh, vh, attn_mask, *, bsz, num_heads):
    """Attention + head-averaged weights.  qh/kh/vh:(B*H,seq,hd) -> ((B*H,T,hd),(B,T,S))."""
    BH, T, hd = qh.shape
    S = kh.shape[1]
    H = num_heads
    has_mask = attn_mask is not None
    tq = _pick_tile(T, 128, _sublane_quantum(qh.dtype))
    vmem_limit = _gemm_config(qh.dtype)[3]

    in_specs = [pl.BlockSpec((H, tq, hd), lambda b, qi: (b, qi, 0)),
                pl.BlockSpec((H, S, hd), lambda b, qi: (b, 0, 0)),
                pl.BlockSpec((H, S, hd), lambda b, qi: (b, 0, 0))]
    args = [qh, kh, vh]
    if has_mask:
        in_specs.append(pl.BlockSpec((H, tq, S), lambda b, qi: (b, qi, 0)))
        args.append(attn_mask)

    return pl.pallas_call(
        _make_attn_weights_kernel(H, has_mask),
        out_shape=(jax.ShapeDtypeStruct((BH, T, hd), qh.dtype),
                   jax.ShapeDtypeStruct((bsz, T, S), jnp.float32)),
        grid=(bsz, T // tq),
        in_specs=in_specs,
        out_specs=(pl.BlockSpec((H, tq, hd), lambda b, qi: (b, qi, 0)),
                   pl.BlockSpec((1, tq, S), lambda b, qi: (b, qi, 0))),
        compiler_params=pltpu.CompilerParams(
            dimension_semantics=("parallel", "parallel"),
            vmem_limit_bytes=vmem_limit),
    )(*args)


# ------------------------------ layout helpers --------------------------------

def _split_heads(x2, seq, bsz, num_heads, head_dim):
    # (seq*bsz, E) -> (bsz*num_heads, seq, head_dim)  [torch reshape + transpose(0,1)]
    return (x2.reshape(seq, bsz, num_heads, head_dim)
              .transpose(1, 2, 0, 3)
              .reshape(bsz * num_heads, seq, head_dim))


def _merge_heads(o_bh, seq, bsz, num_heads, head_dim):
    # (bsz*num_heads, seq, head_dim) -> (seq*bsz, E)
    return (o_bh.reshape(bsz, num_heads, seq, head_dim)
                .transpose(2, 0, 1, 3)
                .reshape(seq * bsz, num_heads * head_dim))


# ------------------------------ module wrapper ---------------------------------

def prepare_kernel_params(params, lora_scaling, num_heads, merge_lora=True):
    """One-time param transform into kernel layout.
       * weights -> (in, out), biases -> (1, out)
       * 1/sqrt(head_dim) folded into the Q projection (no per-score multiply)
       * merge_lora=True (eval): W_eff = W + scaling * B @ A -> plain GEMMs
       * merge_lora=False: factorized LoRA kept; B pre-scaled (Q also absorbs scale)"""
    E = params["q_w"].shape[0]
    scale = 1.0 / math.sqrt(E // num_heads)

    kp = {
        "k_w": params["k_w"].T, "k_b": params["k_b"].reshape(1, -1),
        "o_w": params["o_w"].T, "o_b": params["o_b"].reshape(1, -1),
    }
    if merge_lora:
        q_eff = params["q_w"] + lora_scaling * params["q_lb"] @ params["q_la"]
        v_eff = params["v_w"] + lora_scaling * params["v_lb"] @ params["v_la"]
        kp.update({
            "q_w": scale * q_eff.T, "q_b": scale * params["q_b"].reshape(1, -1),
            "v_w": v_eff.T, "v_b": params["v_b"].reshape(1, -1),
        })
    else:
        kp.update({
            "q_w": scale * params["q_w"].T, "q_b": scale * params["q_b"].reshape(1, -1),
            "q_la": params["q_la"].T, "q_lb": (scale * lora_scaling) * params["q_lb"].T,
            "v_w": params["v_w"].T, "v_b": params["v_b"].reshape(1, -1),
            "v_la": params["v_la"].T, "v_lb": lora_scaling * params["v_lb"].T,
        })
    return kp


def lora_mha_forward(kp, q, k, v, attn_mask, *, num_heads, need_weights=True):
    """LORAMultiheadAttention.forward (lora_r > 0 path, batch_first=False, eval)."""
    T, B, E = q.shape
    S = k.shape[0]
    H = num_heads
    hd = E // H

    x_q = q.reshape(T * B, E)
    x_k = k.reshape(S * B, E)
    x_v = v.reshape(S * B, E)

    if "q_la" in kp:                        # factorized LoRA kept (hoisted x@A)
        q2 = pallas_lora_linear(x_q, kp["q_w"], kp["q_b"], kp["q_la"], kp["q_lb"])
        v2 = pallas_lora_linear(x_v, kp["v_w"], kp["v_b"], kp["v_la"], kp["v_lb"])
    else:                                   # eval-merged weights -> single GEMM
        q2 = pallas_linear(x_q, kp["q_w"], kp["q_b"])
        v2 = pallas_linear(x_v, kp["v_w"], kp["v_b"])
    k2 = pallas_linear(x_k, kp["k_w"], kp["k_b"])

    qh = _split_heads(q2, T, B, H, hd)
    kh = _split_heads(k2, S, B, H, hd)
    vh = _split_heads(v2, S, B, H, hd)

    if need_weights:
        o_bh, aw = pallas_attention_with_weights(qh, kh, vh, attn_mask,
                                                 bsz=B, num_heads=H)
    else:
        o_bh = pallas_flash_attention(qh, kh, vh, attn_mask)
        aw = None

    o_flat = _merge_heads(o_bh, T, B, H, hd)
    o = pallas_linear(o_flat, kp["o_w"], kp["o_b"]).reshape(T, B, E)
    return o, aw


# ------------------------------ reference -------------------------------------

def reference_forward(params, q, k, v, attn_mask, *, num_heads, lora_scaling):
    T, B, E = q.shape
    S = k.shape[0]
    H = num_heads
    hd = E // H
    scale = 1.0 / math.sqrt(hd)

    def lin(x, w, b):
        return x @ w.T + b

    def lora_lin(x, w, b, la, lb):
        return lin(x, w, b) + lora_scaling * ((x @ la.T) @ lb.T)

    q2 = lora_lin(q.reshape(T * B, E), params["q_w"], params["q_b"],
                  params["q_la"], params["q_lb"])
    k2 = lin(k.reshape(S * B, E), params["k_w"], params["k_b"])
    v2 = lora_lin(v.reshape(S * B, E), params["v_w"], params["v_b"],
                  params["v_la"], params["v_lb"])

    qh = q2.reshape(T, B * H, hd).transpose(1, 0, 2)
    kh = k2.reshape(S, B * H, hd).transpose(1, 0, 2)
    vh = v2.reshape(S, B * H, hd).transpose(1, 0, 2)

    s = scale * jnp.einsum("btd,bsd->bts", qh, kh)
    if attn_mask is not None:
        s = attn_mask + s
    a = jax.nn.softmax(s, axis=-1)
    o_bh = jnp.einsum("bts,bsd->btd", a, vh)
    o_flat = o_bh.transpose(1, 0, 2).reshape(T * B, E)
    o = (o_flat @ params["o_w"].T + params["o_b"]).reshape(T, B, E)
    aw = a.reshape(B, H, T, S).sum(axis=1) / H
    return o, aw


# --------------------------------- main ----------------------------------------

if __name__ == "__main__":
    embed_dim = 128
    num_heads = 4
    tgt_len = 8
    src_len = 8
    bsz = 2
    lora_r = 4
    lora_alpha = 2.0
    lora_scaling = lora_alpha / lora_r

    key = jax.random.PRNGKey(0)
    keys = jax.random.split(key, 16)

    def rnd(kk, shape, s=0.1):
        return (s * jax.random.normal(kk, shape)).astype(jnp.float32)

    # Parameter shapes exactly as the PyTorch module stores them (lora_b is
    # zero-init in __init__; random here so the LoRA branch is exercised).
    params = {
        "q_w": rnd(keys[0], (embed_dim, embed_dim)),
        "q_b": rnd(keys[1], (embed_dim,)),
        "q_la": rnd(keys[2], (lora_r, embed_dim)),
        "q_lb": rnd(keys[3], (embed_dim, lora_r)),
        "k_w": rnd(keys[4], (embed_dim, embed_dim)),
        "k_b": rnd(keys[5], (embed_dim,)),
        "v_w": rnd(keys[6], (embed_dim, embed_dim)),
        "v_b": rnd(keys[7], (embed_dim,)),
        "v_la": rnd(keys[8], (lora_r, embed_dim)),
        "v_lb": rnd(keys[9], (embed_dim, lora_r)),
        "o_w": rnd(keys[10], (embed_dim, embed_dim)),
        "o_b": rnd(keys[11], (embed_dim,)),
    }

    q = rnd(keys[12], (tgt_len, bsz, embed_dim), s=1.0)
    k = rnd(keys[13], (src_len, bsz, embed_dim), s=1.0)
    v = rnd(keys[14], (src_len, bsz, embed_dim), s=1.0)
    attn_mask = rnd(keys[15], (bsz * num_heads, tgt_len, src_len), s=0.5)

    o_ref, aw_ref = reference_forward(params, q, k, v, attn_mask,
                                      num_heads=num_heads, lora_scaling=lora_scaling)
    o_ref_nm, aw_ref_nm = reference_forward(params, q, k, v, None,
                                            num_heads=num_heads,
                                            lora_scaling=lora_scaling)

    # --- merged-LoRA eval params (default) --------------------------------------
    kp = prepare_kernel_params(params, lora_scaling, num_heads, merge_lora=True)

    # need_weights=True path (exact softmax + head-averaged weights)
    o, aw = lora_mha_forward(kp, q, k, v, attn_mask, num_heads=num_heads,
                             need_weights=True)
    o = jax.block_until_ready(o)
    aw = jax.block_until_ready(aw)
    assert o.shape == (tgt_len, bsz, embed_dim)
    assert aw.shape == (bsz, tgt_len, src_len)
    assert jnp.allclose(o, o_ref, atol=2e-2, rtol=2e-2), \
        float(jnp.max(jnp.abs(o - o_ref)))
    assert jnp.allclose(aw, aw_ref, atol=2e-2, rtol=2e-2), \
        float(jnp.max(jnp.abs(aw - aw_ref)))

    # production path: flash attention, no attention-weights output
    o2, aw2 = lora_mha_forward(kp, q, k, v, attn_mask, num_heads=num_heads,
                               need_weights=False)
    o2 = jax.block_until_ready(o2)
    assert aw2 is None
    assert jnp.allclose(o2, o_ref, atol=2e-2, rtol=2e-2)

    # attn_mask=None: no zero mask is ever materialized or DMAed
    o3, aw3 = lora_mha_forward(kp, q, k, v, None, num_heads=num_heads,
                               need_weights=True)
    o3 = jax.block_until_ready(o3)
    aw3 = jax.block_until_ready(aw3)
    assert jnp.allclose(o3, o_ref_nm, atol=2e-2, rtol=2e-2)
    assert jnp.allclose(aw3, aw_ref_nm, atol=2e-2, rtol=2e-2)
    o4, _ = lora_mha_forward(kp, q, k, v, None, num_heads=num_heads,
                             need_weights=False)
    o4 = jax.block_until_ready(o4)
    assert jnp.allclose(o4, o_ref_nm, atol=2e-2, rtol=2e-2)

    # factorized LoRA kept (hoisted x@A path)
    kp_u = prepare_kernel_params(params, lora_scaling, num_heads, merge_lora=False)
    o5, _ = lora_mha_forward(kp_u, q, k, v, attn_mask, num_heads=num_heads,
                             need_weights=False)
    o5 = jax.block_until_ready(o5)
    assert jnp.allclose(o5, o_ref, atol=2e-2, rtol=2e-2)

    # bf16 activations/weights (v6e/v7x MXU path), f32 accumulation in-kernel
    to_bf16 = lambda t: jax.tree_util.tree_map(lambda a: a.astype(jnp.bfloat16), t)
    o_bf, _ = lora_mha_forward(to_bf16(kp), to_bf16(q), to_bf16(k), to_bf16(v),
                               attn_mask.astype(jnp.bfloat16),
                               num_heads=num_heads, need_weights=False)
    o_bf = jax.block_until_ready(o_bf)
    assert jnp.allclose(o_bf.astype(jnp.float32), o_ref, atol=1e-1, rtol=1e-1)

    print("KERNEL_OK")
</pallas_src>

<mosaic_0001>
module attributes {stable_mosaic.version = 11 : i64} {
  func.func @_linear_kernel(%arg0: i32, %arg1: i32, %arg2: i32, %arg3: memref<16x128xf32, #tpu.memory_space<vmem>>, %arg4: memref<128x128xf32, #tpu.memory_space<vmem>>, %arg5: memref<1x128xf32, #tpu.memory_space<vmem>>, %arg6: memref<16x128xf32, #tpu.memory_space<vmem>>, %arg7: memref<16x128xf32, #tpu.memory_space<vmem>>) attributes {dimension_semantics = [#tpu.dimension_semantics<parallel>, #tpu.dimension_semantics<parallel>, #tpu.dimension_semantics<arbitrary>], iteration_bounds = array<i64: 1, 1, 1>, scalar_prefetch = 0 : i64, scratch_operands = 1 : i64, tpu.core_type = #tpu.core_type<tc>, window_params = [{transform_indices = @transform_0, window_bounds = array<i64: 16, 128>}, {transform_indices = @transform_1, window_bounds = array<i64: 128, 128>}, {transform_indices = @transform_2, window_bounds = array<i64: 1, 128>}, {transform_indices = @transform_3, window_bounds = array<i64: 16, 128>}]} {
    %c0_i32 = arith.constant 0 : i32
    %0 = arith.cmpi eq, %arg2, %c0_i32 : i32
    %1 = arith.extui %0 : i1 to i32
    %c0_i32_0 = arith.constant 0 : i32
    %2 = arith.cmpi ne, %1, %c0_i32_0 : i32
    scf.if %2 {
      %cst_10 = arith.constant 0.000000e+00 : f32
      %12 = vector.broadcast %cst_10 : f32 to vector<16x128xf32>
      %c0_11 = arith.constant 0 : index
      %c0_12 = arith.constant 0 : index
      %13 = vector.load %arg7[%c0_11, %c0_12] : memref<16x128xf32, #tpu.memory_space<vmem>>, vector<16x128xf32>
      tpu.vector_store %arg7[%c0_11, %c0_12], %12 {strides = array<i32>} : memref<16x128xf32, #tpu.memory_space<vmem>>, vector<16x128xf32>,
    } else {
    }
    %c0 = arith.constant 0 : index
    %c0_1 = arith.constant 0 : index
    %3 = vector.load %arg7[%c0, %c0_1] : memref<16x128xf32, #tpu.memory_space<vmem>>, vector<16x128xf32>
    %c0_2 = arith.constant 0 : index
    %c0_3 = arith.constant 0 : index
    %4 = vector.load %arg3[%c0_2, %c0_3] : memref<16x128xf32, #tpu.memory_space<vmem>>, vector<16x128xf32>
    %c0_4 = arith.constant 0 : index
    %c0_5 = arith.constant 0 : index
    %5 = vector.load %arg4[%c0_4, %c0_5] : memref<128x128xf32, #tpu.memory_space<vmem>>, vector<128x128xf32>
    %cst = arith.constant dense<0.000000e+00> : vector<16x128xf32>
    %6 = tpu.matmul %4, %5, %cst {dimension_numbers = #tpu.dot_dimension_numbers<[1], [0], [0], [1], [0, 0, 1, 1], [], []>} : vector<16x128xf32>, vector<128x128xf32>, vector<16x128xf32> -> vector<16x128xf32>
    %7 = arith.addf %3, %6 : vector<16x128xf32>
    %c0_6 = arith.constant 0 : index
    %c0_7 = arith.constant 0 : index
    %8 = vector.load %arg7[%c0_6, %c0_7] : memref<16x128xf32, #tpu.memory_space<vmem>>, vector<16x128xf32>
    tpu.vector_store %arg7[%c0_6, %c0_7], %7 {strides = array<i32>} : memref<16x128xf32, #tpu.memory_space<vmem>>, vector<16x128xf32>,
    %c0_i32_8 = arith.constant 0 : i32
    %9 = arith.cmpi eq, %arg2, %c0_i32_8 : i32
    %10 = arith.extui %9 : i1 to i32
    %c0_i32_9 = arith.constant 0 : i32
    %11 = arith.cmpi ne, %10, %c0_i32_9 : i32
    scf.if %11 {
      %c0_10 = arith.constant 0 : index
      %c0_11 = arith.constant 0 : index
      %12 = vector.load %arg7[%c0_10, %c0_11] : memref<16x128xf32, #tpu.memory_space<vmem>>, vector<16x128xf32>
      %c0_12 = arith.constant 0 : index
      %c0_13 = arith.constant 0 : index
      %13 = vector.load %arg5[%c0_12, %c0_13] : memref<1x128xf32, #tpu.memory_space<vmem>>, vector<1x128xf32>
      %14 = vector.broadcast %13 : vector<1x128xf32> to vector<16x128xf32>
      %15 = arith.addf %12, %14 : vector<16x128xf32>
      %c0_14 = arith.constant 0 : index
      %c0_15 = arith.constant 0 : index
      %16 = vector.load %arg6[%c0_14, %c0_15] : memref<16x128xf32, #tpu.memory_space<vmem>>, vector<16x128xf32>
      tpu.vector_store %arg6[%c0_14, %c0_15], %15 {strides = array<i32>} : memref<16x128xf32, #tpu.memory_space<vmem>>, vector<16x128xf32>,
    } else {
    }
    return
  }
  func.func @transform_0(%arg0: i32, %arg1: i32, %arg2: i32) -> (i32, i32) {
    %c0_i32 = arith.constant 0 : i32
    return %arg0, %arg2 : i32, i32
  }
  func.func @transform_1(%arg0: i32, %arg1: i32, %arg2: i32) -> (i32, i32) {
    %c0_i32 = arith.constant 0 : i32
    return %arg2, %arg1 : i32, i32
  }
  func.func @transform_2(%arg0: i32, %arg1: i32, %arg2: i32) -> (i32, i32) {
    %c0_i32 = arith.constant 0 : i32
    %c0_i32_0 = arith.constant 0 : i32
    return %c0_i32, %arg1 : i32, i32
  }
  func.func @transform_3(%arg0: i32, %arg1: i32, %arg2: i32) -> (i32, i32) {
    %c0_i32 = arith.constant 0 : i32
    return %arg0, %arg1 : i32, i32
  }
}

</mosaic_0001>

<llo_original>
// kernel: tpu_custom_call.1
$region0: #{tpu_custom_call.1}
  #allocation0 [shape = 'u32[]', space=smem, size = 0x4, offset = 0x4, fixed_abs, tag = 'smem constant byte address 0x4 - core index']
  #allocation1 [shape = 'u32[144,128]{1,0:T(1,128)}', space=vmem, size = 0x12000, scoped, tag = 'internal scratch']
  #allocation2 [shape = 'f32[16,128]{1,0:T(8,128)}', space=vmem, size = 0x2000, scoped, tag = 'scratch operand']
  %s0 = inlined_call_operand.hbm [shape: f32[16,128], index: 0, kind: input, shape index: {}]
  %s1 = inlined_call_operand.hbm [shape: f32[128,128], index: 1, kind: input, shape index: {}]
  %s2 = inlined_call_operand.vmem [shape: f32[1,128], index: 2, kind: input, shape index: {}]
  %s3 = inlined_call_operand.hbm [shape: f32[16,128], index: 3, kind: output, shape index: {}]
  %s4 = sld [smem:[#allocation0]]
  $region38: #{tpu_custom_call.1} parent=0
    _
  %s6 = ssub.s32 1, %s4
  %s7 = scalar_select 0, %s6, %s4
  $region1: #{tpu_custom_call.1} parent=0
    #allocation3 [shape = 'u8[8192]{0}', space=vmem, size = 0x2000, scoped, tag = 'input window, operand 0, single buffered']
    #allocation4 [shape = 's32[1]{0}', space=sflag, size = 0x4, scoped, tag = 'scoped memory for tpu_custom_call.1']
    #allocation5 [shape = 's32[1]{0}', space=sflag, size = 0x4, scoped, tag = 'scoped memory for tpu_custom_call.1']
    #allocation6 [shape = 'u8[65536]{0}', space=vmem, size = 0x10000, scoped, tag = 'input window, operand 1, single buffered']
    #allocation7 [shape = 's32[1]{0}', space=sflag, size = 0x4, scoped, tag = 'scoped memory for tpu_custom_call.1']
    #allocation8 [shape = 'u8[8192]{0}', space=vmem, size = 0x2000, scoped, tag = 'output window, operand 0, single buffered']
    %8 = vsyncpa [#allocation4], 0
    %9 = vsyncpa [#allocation7], 0
    %10 = vsyncpa [#allocation5], 0
    // Predicated region
    $region2: #{tpu_custom_call.1} parent=1 // pred_check
      _
    $region3: #{tpu_custom_call.1} parent=1 // pred_check_branch
      %12 = sbr.rel (0) target = $region5
    $region4: #{tpu_custom_call.1} parent=1 // pred_region
      %s14 = ssub.s32 256, 256
      %15 = vsyncadd [#allocation4], %s14
      %s16 = sshll.u32 [#allocation3], 4
      %s17 = int_to_ptr.vmem [resolvable:$true] %s16
      %22 = dma.hbm_to_vmem [thread:$0]  %s0, 256, %s17, [#allocation4], 128, 128, 8
    $region5: #{tpu_custom_call.1} parent=1 // pred_fallthru
      _
    // Predicated region
    $region6: #{tpu_custom_call.1} parent=1 // pred_check
      _
    $region7: #{tpu_custom_call.1} parent=1 // pred_check_branch
      %24 = sbr.rel (0) target = $region9
    $region8: #{tpu_custom_call.1} parent=1 // pred_region
      %s26 = ssub.s32 2048, 2048
      %27 = vsyncadd [#allocation7], %s26
      %s28 = sshll.u32 [#allocation6], 4
      %s29 = int_to_ptr.vmem [resolvable:$true] %s28
      %34 = dma.hbm_to_vmem [thread:$0]  %s1, 2048, %s29, [#allocation7], 128, 128, 8
    $region9: #{tpu_custom_call.1} parent=1 // pred_fallthru
      _
    // Predicated region
    $region10: #{tpu_custom_call.1} parent=1 // pred_check
      _
    $region11: #{tpu_custom_call.1} parent=1 // pred_check_branch
      %36 = sbr.rel (0) target = $region13
    $region12: #{tpu_custom_call.1} parent=1 // pred_region
      _
    $region13: #{tpu_custom_call.1} parent=1 // pred_fallthru
      _
    // Predicated region
    $region14: #{tpu_custom_call.1} parent=1 // pred_check
      _
    $region15: #{tpu_custom_call.1} parent=1 // pred_check_branch
      %38 = sbr.rel (0) target = $region17
    $region16: #{tpu_custom_call.1} parent=1 // pred_region
      %39 = dma.done [#allocation4], 256
    $region17: #{tpu_custom_call.1} parent=1 // pred_fallthru
      _
    // Predicated region
    $region18: #{tpu_custom_call.1} parent=1 // pred_check
      _
    $region19: #{tpu_custom_call.1} parent=1 // pred_check_branch
      %41 = sbr.rel (0) target = $region21
    $region20: #{tpu_custom_call.1} parent=1 // pred_region
      %42 = dma.done [#allocation7], 2048
    $region21: #{tpu_custom_call.1} parent=1 // pred_fallthru
      _
    %p43 = scmp.eq.s32.totalorder 0, 0
    // Predicated region
    $region22: #{tpu_custom_call.1} parent=1 // pred_check
      %p44 = pneg %p43
    $region23: #{tpu_custom_call.1} parent=1 // pred_check_branch
      %46 = sbr.rel (%p44) target = $region25
    $region24: #{tpu_custom_call.1} parent=1 // pred_region
      %47 = vst [vmem:[#allocation2] sm:$0xff] 0.0
      %48 = vst [vmem:[#allocation2 + $0x8] sm:$0xff] 0.0
    $region25: #{tpu_custom_call.1} parent=1 // pred_fallthru
      _
    %v49 = vld [vmem:[#allocation2] sm:$0xff]
    %v50 = vld [vmem:[#allocation2 + $0x8] sm:$0xff]
    %v51 = vld [vmem:[#allocation3] sm:$0xff]
    %v52 = vld [vmem:[#allocation3 + $0x8] sm:$0xff]
    %v53 = vld [vmem:[#allocation6] sm:$0xff]
    %v54 = vld [vmem:[#allocation6 + $0x8] sm:$0xff]
    %v55 = vld [vmem:[#allocation6 + $0x10] sm:$0xff]
    %v56 = vld [vmem:[#allocation6 + $0x18] sm:$0xff]
    %v57 = vld [vmem:[#allocation6 + $0x20] sm:$0xff]
    %v58 = vld [vmem:[#allocation6 + $0x28] sm:$0xff]
    %v59 = vld [vmem:[#allocation6 + $0x30] sm:$0xff]
    %v60 = vld [vmem:[#allocation6 + $0x38] sm:$0xff]
    %v61 = vld [vmem:[#allocation6 + $0x40] sm:$0xff]
    %v62 = vld [vmem:[#allocation6 + $0x48] sm:$0xff]
    %v63 = vld [vmem:[#allocation6 + $0x50] sm:$0xff]
    %v64 = vld [vmem:[#allocation6 + $0x58] sm:$0xff]
    %v65 = vld [vmem:[#allocation6 + $0x60] sm:$0xff]
    %v66 = vld [vmem:[#allocation6 + $0x68] sm:$0xff]
    %v67 = vld [vmem:[#allocation6 + $0x70] sm:$0xff]
    %v68 = vld [vmem:[#allocation6 + $0x78] sm:$0xff]
    %69 = vmatprep.subr.mxu0 0.0
    %70 = vmatpush1.msra.mxu0 %v68
    %71 = vmatprep.subr.mxu0 0.0
    %72 = vmatpush1.msra.mxu0 %v67
    %73 = vmatprep.subr.mxu0 0.0
    %74 = vmatpush1.msra.mxu0 %v66
    %75 = vmatprep.subr.mxu0 0.0
    %76 = vmatpush1.msra.mxu0 %v65
    %77 = vmatprep.subr.mxu0 0.0
    %78 = vmatpush1.msra.mxu0 %v64
    %79 = vmatprep.subr.mxu0 0.0
    %80 = vmatpush1.msra.mxu0 %v63
    %81 = vmatprep.subr.mxu0 0.0
    %82 = vmatpush1.msra.mxu0 %v62
    %83 = vmatprep.subr.mxu0 0.0
    %84 = vmatpush1.msra.mxu0 %v61
    %85 = vmatprep.subr.mxu0 0.0
    %86 = vmatpush1.msra.mxu0 %v60
    %87 = vmatprep.subr.mxu0 0.0
    %88 = vmatpush1.msra.mxu0 %v59
    %89 = vmatprep.subr.mxu0 0.0
    %90 = vmatpush1.msra.mxu0 %v58
    %91 = vmatprep.subr.mxu0 0.0
    %92 = vmatpush1.msra.mxu0 %v57
    %93 = vmatprep.subr.mxu0 0.0
    %94 = vmatpush1.msra.mxu0 %v56
    %95 = vmatprep.subr.mxu0 0.0
    %96 = vmatpush1.msra.mxu0 %v55
    %97 = vmatprep.subr.mxu0 0.0
    %98 = vmatpush1.msra.mxu0 %v54
    %99 = vmatprep.subr.mxu0 0.0
    %100 = vmatpush1.msra.mxu0 %v53
    %101 = vmatprep.subr.mxu0 0.0
    %102 = vmatpush2.msra.mxu0 0.0
    %103 = vmatprep.subr.mxu0 0.0
    %104 = vmatpush2.msra.mxu0 0.0
    %105 = vmatprep.subr.mxu0 0.0
    %106 = vmatpush2.msra.mxu0 0.0
    %107 = vmatprep.subr.mxu0 0.0
    %108 = vmatpush2.msra.mxu0 0.0
    %109 = vmatprep.subr.mxu0 0.0
    %110 = vmatpush2.msra.mxu0 0.0
    %111 = vmatprep.subr.mxu0 0.0
    %112 = vmatpush2.msra.mxu0 0.0
    %113 = vmatprep.subr.mxu0 0.0
    %114 = vmatpush2.msra.mxu0 0.0
    %115 = vmatprep.subr.mxu0 0.0
    %116 = vmatpush2.msra.mxu0 0.0
    %117 = vmatprep.subr.mxu0 0.0
    %118 = vmatpush2.msra.mxu0 0.0
    %119 = vmatprep.subr.mxu0 0.0
    %120 = vmatpush2.msra.mxu0 0.0
    %121 = vmatprep.subr.mxu0 0.0
    %122 = vmatpush2.msra.mxu0 0.0
    %123 = vmatprep.subr.mxu0 0.0
    %124 = vmatpush2.msra.mxu0 0.0
    %125 = vmatprep.subr.mxu0 0.0
    %126 = vmatpush2.msra.mxu0 0.0
    %127 = vmatprep.subr.mxu0 0.0
    %128 = vmatpush2.msra.mxu0 0.0
    %129 = vmatprep.subr.mxu0 0.0
    %130 = vmatpush2.msra.mxu0 0.0
    %131 = vmatprep.subr.mxu0 0.0
    %132 = vmatpush2.msra.mxu0 0.0
    %133 = vmatprep.mubr.f32.mxu0 0.0
    %134 = vmatmul.mubr.f32.gmra.mxu0 %v51
    %v135 = vpop.f32.mrf.mxu0
    %v136 = vadd.f32 0.0, %v135
    %v137 = vpop.f32.mrf.mxu0
    %138 = vmatprep.mubr.f32.mxu0 0.0
    %139 = vmatmul.mubr.f32.gmra.mxu0 %v52
    %v140 = vpop.f32.mrf.mxu0
    %v141 = vadd.f32 0.0, %v140
    %v142 = vpop.f32.mrf.mxu0
    %143 = vdwg.mxu0
    %v144 = vadd.f32 %v49, %v136
    %v145 = vadd.f32 %v50, %v141
    %146 = vst [vmem:[#allocation2] sm:$0xff] %v144
    %147 = vst [vmem:[#allocation2 + $0x8] sm:$0xff] %v145
    // Predicated region
    $region26: #{tpu_custom_call.1} parent=1 // pred_check
      %p148 = pneg %p43
    $region27: #{tpu_custom_call.1} parent=1 // pred_check_branch
      %150 = sbr.rel (%p148) target = $region29
    $region28: #{tpu_custom_call.1} parent=1 // pred_region
      %v151 = vld [vmem:[#allocation2] sm:$0xff]
      %v152 = vld [vmem:[#allocation2 + $0x8] sm:$0xff]
      %v153 = vld [vmem:[%s2] sm:$0x1]
      %v155 = vlaneseq
      %v156 = vshrl.u32 %v155, 7
      %v157 = vsub.s32 0, %v156
      %v158 = vrot.slane %v153, %v157
      %v160 = vadd.f32 %v151, %v158
      %v161 = vadd.f32 %v152, %v158
      %162 = vst [vmem:[#allocation8] sm:$0xff] %v160
      %163 = vst [vmem:[#allocation8 + $0x8] sm:$0xff] %v161
    $region29: #{tpu_custom_call.1} parent=1 // pred_fallthru
      _
    // Predicated region
    $region30: #{tpu_custom_call.1} parent=1 // pred_check
      _
    $region31: #{tpu_custom_call.1} parent=1 // pred_check_branch
      %165 = sbr.rel (0) target = $region33
    $region32: #{tpu_custom_call.1} parent=1 // pred_region
      %s167 = ssub.s32 256, 256
      %168 = vsyncadd [#allocation5], %s167
      %s169 = sshll.u32 [#allocation8], 4
      %s170 = int_to_ptr.vmem [resolvable:$true] %s169
      %175 = dma.vmem_to_hbm [thread:$0]  %s170, 256, %s3, [#allocation5], 128, 128, 8
    $region33: #{tpu_custom_call.1} parent=1 // pred_fallthru
      _
    // Predicated region
    $region34: #{tpu_custom_call.1} parent=1 // pred_check
      _
    $region35: #{tpu_custom_call.1} parent=1 // pred_check_branch
      %177 = sbr.rel (0) target = $region37
    $region36: #{tpu_custom_call.1} parent=1 // pred_region
      %178 = dma.done [#allocation5], 256
    $region37: #{tpu_custom_call.1} parent=1 // pred_fallthru
      _
    %179 = vsyncpa [#allocation4], 1
    %180 = vsyncpa [#allocation7], 1
    %181 = vsyncpa [#allocation5], 1

</llo_original>
